<compile_context>
chip_gen: v5e
topology: v5e:2x2
jax: 0.10.0
libtpu: 0.0.40
codegen_flags: <defaults>
</compile_context>

<pallas_src>
import functools
import math

import jax
import jax.numpy as jnp
from jax.experimental import pallas as pl
from jax.experimental.pallas import tpu as pltpu


_LANE = 128   # lane width: channel dims padded to multiples of this
_SUB = 8      # sublane width: row tiles padded to multiples of this


# ---------------------------------------------------------------------------
# Kernels
# ---------------------------------------------------------------------------

def _agg_transform_kernel(a_ref, x_ref, w_ref, b_ref, o_ref, acc_ref, *,
                          apply_sigmoid):
    """Fused aggregate-first layer: out_tile = (sum_k A[i,k] @ X[k]) @ W + b."""
    k = pl.program_id(1)

    @pl.when(k == 0)
    def _init():
        acc_ref[...] = jnp.zeros_like(acc_ref)

    acc_ref[...] += jnp.dot(a_ref[...], x_ref[...],
                            preferred_element_type=jnp.float32)

    @pl.when(k == pl.num_programs(1) - 1)
    def _finalize():
        h = jnp.dot(acc_ref[...].astype(w_ref.dtype), w_ref[...],
                    preferred_element_type=jnp.float32)
        h = h + b_ref[...]
        if apply_sigmoid:
            h = jax.nn.sigmoid(h)
        o_ref[...] = h.astype(o_ref.dtype)


def _xw_kernel(x_ref, w_ref, o_ref):
    """XW_tile = X_tile @ W (dense per-node transform, computed once)."""
    o_ref[...] = jnp.dot(x_ref[...], w_ref[...],
                         preferred_element_type=jnp.float32).astype(o_ref.dtype)


def _agg_kernel(a_ref, xw_ref, b_ref, o_ref, acc_ref, *, apply_sigmoid):
    """Aggregate already-transformed features: out_tile = sum_k A[i,k]@XW[k] + b."""
    k = pl.program_id(1)

    @pl.when(k == 0)
    def _init():
        acc_ref[...] = jnp.zeros_like(acc_ref)

    acc_ref[...] += jnp.dot(a_ref[...], xw_ref[...],
                            preferred_element_type=jnp.float32)

    @pl.when(k == pl.num_programs(1) - 1)
    def _finalize():
        h = acc_ref[...] + b_ref[...]
        if apply_sigmoid:
            h = jax.nn.sigmoid(h)
        o_ref[...] = h.astype(o_ref.dtype)


# ---------------------------------------------------------------------------
# Tiling / VMEM sizing helpers
# ---------------------------------------------------------------------------

def _round_up(x, m):
    return (x + m - 1) // m * m


def _pad2(a, rows, cols):
    return jnp.pad(a, ((0, rows - a.shape[0]), (0, cols - a.shape[1])))


def _vmem_capacity_bytes():
    """Per-core physical VMEM (128 MiB on v5e/v6e, 64 MiB on v7x)."""
    try:
        cap = int(getattr(pltpu.get_tpu_info(), "vmem_capacity_bytes", 0))
        if cap > 0:
            return cap
    except Exception:
        pass
    return 64 << 20  # conservative fallback (v7x-sized)


def _fused_vmem_bytes(tm, tk, c_in_pad, c_out_pad, out_isz):
    """Exact-ish per-step VMEM for the fused kernel (double-buffered blocks)."""
    return (2 * tm * tk * 2                  # A tile, bf16
            + 2 * tk * c_in_pad * 2          # X K-tile, bf16
            + 2 * c_in_pad * c_out_pad * 2   # W (constant, still double-buffered)
            + 2 * _SUB * c_out_pad * 4       # bias (padded to an (8,128) tile)
            + 2 * tm * c_out_pad * out_isz   # output tile
            + tm * c_in_pad * 4              # f32 accumulator scratch
            + tm * c_out_pad * 4)            # f32 projection intermediate


def _choose_tiling(n, c_feat_pad, vmem_budget):
    """Pick (n_pad, tm, tk): row tile tm, contraction tile tk."""
    out_isz = 4  # worst case: final layer writes f32
    n_small = _round_up(n, 2 * _SUB)
    if n_small <= 2 * _LANE:
        # Small graph: single K step, but >= 2 row tiles so the "parallel"
        # axis has work for both TensorCores / the pipeline can overlap.
        n_pad = n_small
        tm = max(_SUB, n_pad // 2)
        tk = n_pad
        return n_pad, tm, tk

    # Large graph: per-generation row tile, K-tiled contraction.
    tm = 512 if vmem_budget >= (80 << 20) else 256
    tm = min(tm, _round_up(n, _LANE))
    tk = min(8 * tm, _round_up(n, _LANE))
    while (_fused_vmem_bytes(tm, tk, c_feat_pad, c_feat_pad, out_isz)
           > vmem_budget and tk > _LANE):
        tk = max(_LANE, _round_up(tk // 2, _LANE))
    while (_fused_vmem_bytes(tm, tk, c_feat_pad, c_feat_pad, out_isz)
           > vmem_budget and tm > _LANE):
        tm //= 2
    n_pad = _round_up(n, math.lcm(tm, tk))
    return n_pad, tm, tk


# ---------------------------------------------------------------------------
# Layer wrapper
# ---------------------------------------------------------------------------

def _gcn_layer(a_p, x_p, w_p, b_p, *, tm, tk, apply_sigmoid, out_dtype,
               aggregate_first, vmem_limit):
    """One GCNConv layer on padded/bf16 inputs. Returns padded (N_pad, C_out_pad)."""
    n_pad = a_p.shape[0]
    c_in_pad = x_p.shape[1]
    c_out_pad = w_p.shape[1]
    grid = (n_pad // tm, n_pad // tk)
    cp = pltpu.CompilerParams(
        dimension_semantics=("parallel", "arbitrary"),
        vmem_limit_bytes=int(vmem_limit))

    if aggregate_first:
        # (sum_k A[i,k] @ X[k]) @ W + b : single fused kernel per layer.
        kernel = functools.partial(_agg_transform_kernel,
                                   apply_sigmoid=apply_sigmoid)
        return pl.pallas_call(
            kernel,
            out_shape=jax.ShapeDtypeStruct((n_pad, c_out_pad), out_dtype),
            grid=grid,
            in_specs=[
                pl.BlockSpec((tm, tk), lambda i, k: (i, k)),              # A tile
                pl.BlockSpec((tk, c_in_pad), lambda i, k: (k, 0)),        # X K-tile
                pl.BlockSpec((c_in_pad, c_out_pad), lambda i, k: (0, 0)),  # W
                pl.BlockSpec((1, c_out_pad), lambda i, k: (0, 0)),        # bias
            ],
            out_specs=pl.BlockSpec((tm, c_out_pad), lambda i, k: (i, 0)),
            scratch_shapes=[pltpu.VMEM((tm, c_in_pad), jnp.float32)],
            compiler_params=cp,
        )(a_p, x_p, w_p, b_p)

    # c_in_pad > c_out_pad: transform once (XW = X @ W), then aggregate.
    cp_rows = pltpu.CompilerParams(
        dimension_semantics=("parallel",), vmem_limit_bytes=int(vmem_limit))
    xw = pl.pallas_call(
        _xw_kernel,
        out_shape=jax.ShapeDtypeStruct((n_pad, c_out_pad), jnp.bfloat16),
        grid=(n_pad // tm,),
        in_specs=[
            pl.BlockSpec((tm, c_in_pad), lambda i: (i, 0)),
            pl.BlockSpec((c_in_pad, c_out_pad), lambda i: (0, 0)),
        ],
        out_specs=pl.BlockSpec((tm, c_out_pad), lambda i: (i, 0)),
        compiler_params=cp_rows,
    )(x_p, w_p)

    kernel = functools.partial(_agg_kernel, apply_sigmoid=apply_sigmoid)
    return pl.pallas_call(
        kernel,
        out_shape=jax.ShapeDtypeStruct((n_pad, c_out_pad), out_dtype),
        grid=grid,
        in_specs=[
            pl.BlockSpec((tm, tk), lambda i, k: (i, k)),            # A tile
            pl.BlockSpec((tk, c_out_pad), lambda i, k: (k, 0)),     # XW K-tile
            pl.BlockSpec((1, c_out_pad), lambda i, k: (0, 0)),      # bias
        ],
        out_specs=pl.BlockSpec((tm, c_out_pad), lambda i, k: (i, 0)),
        scratch_shapes=[pltpu.VMEM((tm, c_out_pad), jnp.float32)],
        compiler_params=cp,
    )(a_p, xw, b_p)


# ---------------------------------------------------------------------------
# Forward pass
# ---------------------------------------------------------------------------

def build_normalized_adjacency(edge_index, num_nodes, n_pad=None,
                               dtype=jnp.bfloat16):
    """Dense GCN-normalized adjacency with self-loops (PyG gcn_norm semantics),
    built directly at the padded size and cast to the kernel dtype in one pass
    (no separate wrapper-side pad + cast over the N^2 array)."""
    if n_pad is None:
        n_pad = num_nodes
    src = edge_index[0]
    dst = edge_index[1]
    a = jnp.zeros((n_pad, n_pad), dtype=jnp.float32)
    # A[i, j] = 1 for each edge j -> i (messages flow source -> target)
    a = a.at[dst, src].add(1.0)
    loop = jnp.arange(num_nodes, dtype=jnp.int32)
    a = a.at[loop, loop].add(1.0)                 # self-loops on real nodes only
    deg = jnp.sum(a, axis=1)
    d_inv_sqrt = jnp.where(deg > 0, 1.0 / jnp.sqrt(deg), 0.0)
    a_hat = d_inv_sqrt[:, None] * a * d_inv_sqrt[None, :]
    return a_hat.astype(dtype)


def gcn_forward(x, edge_index, w1, b1, w2, b2):
    """sigmoid(A_hat @ ((A_hat @ (x @ W1) + b1) @ W2) + b2) via Pallas kernels."""
    n = x.shape[0]
    c_in, c_hidden = w1.shape
    c_out = w2.shape[1]

    c_in_pad = _round_up(c_in, _LANE)
    c_hid_pad = _round_up(c_hidden, _LANE)
    c_out_pad = _round_up(c_out, _LANE)
    c_feat_pad = max(c_in_pad, c_hid_pad, c_out_pad)

    vmem_cap = _vmem_capacity_bytes()
    vmem_budget = vmem_cap * 3 // 4               # ~96 MiB v5e/v6e, ~48 MiB v7x
    n_pad, tm, tk = _choose_tiling(n, c_feat_pad, vmem_budget)

    # A_hat: built once, padded + bf16 directly (dominant HBM stream).
    a_p = build_normalized_adjacency(edge_index, n, n_pad=n_pad,
                                     dtype=jnp.bfloat16)

    # Pad + cast the small operands: bf16 MXU inputs, f32 biases (post-accum).
    x_p = _pad2(x, n_pad, c_in_pad).astype(jnp.bfloat16)
    w1_p = _pad2(w1, c_in_pad, c_hid_pad).astype(jnp.bfloat16)
    b1_p = _pad2(b1.reshape(1, -1), 1, c_hid_pad).astype(jnp.float32)
    w2_p = _pad2(w2, c_hid_pad, c_out_pad).astype(jnp.bfloat16)
    b2_p = _pad2(b2.reshape(1, -1), 1, c_out_pad).astype(jnp.float32)

    # aggregate-first decided on padded dims; ties -> fused single kernel.
    h1 = _gcn_layer(a_p, x_p, w1_p, b1_p, tm=tm, tk=tk, apply_sigmoid=False,
                    out_dtype=jnp.bfloat16,
                    aggregate_first=(c_in_pad <= c_hid_pad),
                    vmem_limit=vmem_budget)
    out = _gcn_layer(a_p, h1, w2_p, b2_p, tm=tm, tk=tk, apply_sigmoid=True,
                     out_dtype=jnp.float32,
                     aggregate_first=(c_hid_pad <= c_out_pad),
                     vmem_limit=vmem_budget)

    return out[:n, :c_out]


# ---------------------------------------------------------------------------
# Self-test
# ---------------------------------------------------------------------------

if __name__ == "__main__":
    # Small deterministic problem: 16 nodes, 8 -> 32 -> 4 channels.
    num_nodes = 16
    in_channels = 8
    hidden_channels = 32
    out_channels = 4

    key = jax.random.PRNGKey(0)
    k_x, k_w1, k_w2, k_e = jax.random.split(key, 4)

    x = jax.random.normal(k_x, (num_nodes, in_channels), dtype=jnp.float32)

    # Deterministic undirected ring graph (each edge in both directions).
    srcs = jnp.arange(num_nodes, dtype=jnp.int32)
    dsts = (srcs + 1) % num_nodes
    edge_index = jnp.stack(
        [jnp.concatenate([srcs, dsts]), jnp.concatenate([dsts, srcs])], axis=0
    )  # shape (2, 2*num_nodes)

    # Glorot-style deterministic weights, zero biases (as in GCNConv.__init__).
    w1 = jax.random.uniform(
        k_w1, (in_channels, hidden_channels), dtype=jnp.float32,
        minval=-1.0, maxval=1.0,
    ) * jnp.sqrt(6.0 / (in_channels + hidden_channels))
    b1 = jnp.zeros((1, hidden_channels), dtype=jnp.float32)
    w2 = jax.random.uniform(
        k_w2, (hidden_channels, out_channels), dtype=jnp.float32,
        minval=-1.0, maxval=1.0,
    ) * jnp.sqrt(6.0 / (hidden_channels + out_channels))
    b2 = jnp.zeros((1, out_channels), dtype=jnp.float32)

    out = jax.jit(gcn_forward)(x, edge_index, w1, b1, w2, b2)
    out = jax.block_until_ready(out)

    # Pure-JAX f32 reference of the same math (kernel uses bf16 operands with
    # f32 accumulation, so tolerances are loosened accordingly).
    a_ref = build_normalized_adjacency(edge_index, num_nodes,
                                       n_pad=num_nodes, dtype=jnp.float32)
    ref = jax.nn.sigmoid(a_ref @ ((a_ref @ (x @ w1) + b1) @ w2) + b2)
    assert out.shape == ref.shape
    assert jnp.allclose(out, ref, atol=3e-2, rtol=3e-2), (
        f"max abs err = {jnp.max(jnp.abs(out - ref))}")

    print("KERNEL_OK")
</pallas_src>

<mosaic_0001>
module attributes {stable_mosaic.version = 11 : i64} {
  func.func @_agg_transform_kernel(%arg0: i32, %arg1: i32, %arg2: memref<8x16xbf16, #tpu.memory_space<vmem>>, %arg3: memref<16x128xbf16, #tpu.memory_space<vmem>>, %arg4: memref<128x128xbf16, #tpu.memory_space<vmem>>, %arg5: memref<1x128xf32, #tpu.memory_space<vmem>>, %arg6: memref<8x128xbf16, #tpu.memory_space<vmem>>, %arg7: memref<8x128xf32, #tpu.memory_space<vmem>>) attributes {dimension_semantics = [#tpu.dimension_semantics<parallel>, #tpu.dimension_semantics<arbitrary>], iteration_bounds = array<i64: 2, 1>, scalar_prefetch = 0 : i64, scratch_operands = 1 : i64, tpu.core_type = #tpu.core_type<tc>, window_params = [{transform_indices = @transform_0, window_bounds = array<i64: 8, 16>}, {transform_indices = @transform_1, window_bounds = array<i64: 16, 128>}, {pipeline_mode = #tpu.pipeline_mode<synchronous>, transform_indices = @transform_2, window_bounds = array<i64: 128, 128>}, {pipeline_mode = #tpu.pipeline_mode<synchronous>, transform_indices = @transform_3, window_bounds = array<i64: 1, 128>}, {transform_indices = @transform_4, window_bounds = array<i64: 8, 128>}]} {
    %c0_i32 = arith.constant 0 : i32
    %0 = arith.cmpi eq, %arg1, %c0_i32 : i32
    %1 = arith.extui %0 : i1 to i32
    %c0_i32_0 = arith.constant 0 : i32
    %2 = arith.cmpi ne, %1, %c0_i32_0 : i32
    scf.if %2 {
      %cst_10 = arith.constant 0.000000e+00 : f32
      %12 = vector.broadcast %cst_10 : f32 to vector<8x128xf32>
      %c0_11 = arith.constant 0 : index
      %c0_12 = arith.constant 0 : index
      %13 = vector.load %arg7[%c0_11, %c0_12] : memref<8x128xf32, #tpu.memory_space<vmem>>, vector<8x128xf32>
      tpu.vector_store %arg7[%c0_11, %c0_12], %12 {strides = array<i32>} : memref<8x128xf32, #tpu.memory_space<vmem>>, vector<8x128xf32>,
    } else {
    }
    %c0 = arith.constant 0 : index
    %c0_1 = arith.constant 0 : index
    %3 = vector.load %arg7[%c0, %c0_1] : memref<8x128xf32, #tpu.memory_space<vmem>>, vector<8x128xf32>
    %c0_2 = arith.constant 0 : index
    %c0_3 = arith.constant 0 : index
    %4 = vector.load %arg2[%c0_2, %c0_3] : memref<8x16xbf16, #tpu.memory_space<vmem>>, vector<8x16xbf16>
    %c0_4 = arith.constant 0 : index
    %c0_5 = arith.constant 0 : index
    %5 = vector.load %arg3[%c0_4, %c0_5] : memref<16x128xbf16, #tpu.memory_space<vmem>>, vector<16x128xbf16>
    %cst = arith.constant dense<0.000000e+00> : vector<8x128xf32>
    %6 = tpu.matmul %4, %5, %cst {dimension_numbers = #tpu.dot_dimension_numbers<[1], [0], [0], [1], [0, 0, 1, 1], [], []>} : vector<8x16xbf16>, vector<16x128xbf16>, vector<8x128xf32> -> vector<8x128xf32>
    %7 = arith.addf %3, %6 : vector<8x128xf32>
    %c0_6 = arith.constant 0 : index
    %c0_7 = arith.constant 0 : index
    %8 = vector.load %arg7[%c0_6, %c0_7] : memref<8x128xf32, #tpu.memory_space<vmem>>, vector<8x128xf32>
    tpu.vector_store %arg7[%c0_6, %c0_7], %7 {strides = array<i32>} : memref<8x128xf32, #tpu.memory_space<vmem>>, vector<8x128xf32>,
    %c0_i32_8 = arith.constant 0 : i32
    %9 = arith.cmpi eq, %arg1, %c0_i32_8 : i32
    %10 = arith.extui %9 : i1 to i32
    %c0_i32_9 = arith.constant 0 : i32
    %11 = arith.cmpi ne, %10, %c0_i32_9 : i32
    scf.if %11 {
      %c0_10 = arith.constant 0 : index
      %c0_11 = arith.constant 0 : index
      %12 = vector.load %arg7[%c0_10, %c0_11] : memref<8x128xf32, #tpu.memory_space<vmem>>, vector<8x128xf32>
      %13 = arith.truncf %12 : vector<8x128xf32> to vector<8x128xbf16>
      %c0_12 = arith.constant 0 : index
      %c0_13 = arith.constant 0 : index
      %14 = vector.load %arg4[%c0_12, %c0_13] : memref<128x128xbf16, #tpu.memory_space<vmem>>, vector<128x128xbf16>
      %cst_14 = arith.constant dense<0.000000e+00> : vector<8x128xf32>
      %15 = tpu.matmul %13, %14, %cst_14 {dimension_numbers = #tpu.dot_dimension_numbers<[1], [0], [0], [1], [0, 0, 1, 1], [], []>} : vector<8x128xbf16>, vector<128x128xbf16>, vector<8x128xf32> -> vector<8x128xf32>
      %c0_15 = arith.constant 0 : index
      %c0_16 = arith.constant 0 : index
      %16 = vector.load %arg5[%c0_15, %c0_16] : memref<1x128xf32, #tpu.memory_space<vmem>>, vector<1x128xf32>
      %17 = vector.broadcast %16 : vector<1x128xf32> to vector<8x128xf32>
      %18 = arith.addf %15, %17 : vector<8x128xf32>
      %19 = arith.truncf %18 : vector<8x128xf32> to vector<8x128xbf16>
      %c0_17 = arith.constant 0 : index
      %c0_18 = arith.constant 0 : index
      %20 = vector.load %arg6[%c0_17, %c0_18] : memref<8x128xbf16, #tpu.memory_space<vmem>>, vector<8x128xbf16>
      tpu.vector_store %arg6[%c0_17, %c0_18], %19 {strides = array<i32>} : memref<8x128xbf16, #tpu.memory_space<vmem>>, vector<8x128xbf16>,
    } else {
    }
    return
  }
  func.func @transform_0(%arg0: i32, %arg1: i32) -> (i32, i32) {
    %c0_i32 = arith.constant 0 : i32
    return %arg0, %arg1 : i32, i32
  }
  func.func @transform_1(%arg0: i32, %arg1: i32) -> (i32, i32) {
    %c0_i32 = arith.constant 0 : i32
    %c0_i32_0 = arith.constant 0 : i32
    return %arg1, %c0_i32 : i32, i32
  }
  func.func @transform_2(%arg0: i32, %arg1: i32) -> (i32, i32) {
    %c0_i32 = arith.constant 0 : i32
    %c0_i32_0 = arith.constant 0 : i32
    %c0_i32_1 = arith.constant 0 : i32
    return %c0_i32, %c0_i32_0 : i32, i32
  }
  func.func @transform_3(%arg0: i32, %arg1: i32) -> (i32, i32) {
    %c0_i32 = arith.constant 0 : i32
    %c0_i32_0 = arith.constant 0 : i32
    %c0_i32_1 = arith.constant 0 : i32
    return %c0_i32, %c0_i32_0 : i32, i32
  }
  func.func @transform_4(%arg0: i32, %arg1: i32) -> (i32, i32) {
    %c0_i32 = arith.constant 0 : i32
    %c0_i32_0 = arith.constant 0 : i32
    return %arg0, %c0_i32 : i32, i32
  }
}

module attributes {stable_mosaic.version = 11 : i64} {
  func.func @_agg_transform_kernel(%arg0: i32, %arg1: i32, %arg2: memref<8x16xbf16, #tpu.memory_space<vmem>>, %arg3: memref<16x128xbf16, #tpu.memory_space<vmem>>, %arg4: memref<128x128xbf16, #tpu.memory_space<vmem>>, %arg5: memref<1x128xf32, #tpu.memory_space<vmem>>, %arg6: memref<8x128xf32, #tpu.memory_space<vmem>>, %arg7: memref<8x128xf32, #tpu.memory_space<vmem>>) attributes {dimension_semantics = [#tpu.dimension_semantics<parallel>, #tpu.dimension_semantics<arbitrary>], iteration_bounds = array<i64: 2, 1>, scalar_prefetch = 0 : i64, scratch_operands = 1 : i64, tpu.core_type = #tpu.core_type<tc>, window_params = [{transform_indices = @transform_0, window_bounds = array<i64: 8, 16>}, {transform_indices = @transform_1, window_bounds = array<i64: 16, 128>}, {pipeline_mode = #tpu.pipeline_mode<synchronous>, transform_indices = @transform_2, window_bounds = array<i64: 128, 128>}, {pipeline_mode = #tpu.pipeline_mode<synchronous>, transform_indices = @transform_3, window_bounds = array<i64: 1, 128>}, {transform_indices = @transform_4, window_bounds = array<i64: 8, 128>}]} {
    %c0_i32 = arith.constant 0 : i32
    %0 = arith.cmpi eq, %arg1, %c0_i32 : i32
    %1 = arith.extui %0 : i1 to i32
    %c0_i32_0 = arith.constant 0 : i32
    %2 = arith.cmpi ne, %1, %c0_i32_0 : i32
    scf.if %2 {
      %cst_10 = arith.constant 0.000000e+00 : f32
      %12 = vector.broadcast %cst_10 : f32 to vector<8x128xf32>
      %c0_11 = arith.constant 0 : index
      %c0_12 = arith.constant 0 : index
      %13 = vector.load %arg7[%c0_11, %c0_12] : memref<8x128xf32, #tpu.memory_space<vmem>>, vector<8x128xf32>
      tpu.vector_store %arg7[%c0_11, %c0_12], %12 {strides = array<i32>} : memref<8x128xf32, #tpu.memory_space<vmem>>, vector<8x128xf32>,
    } else {
    }
    %c0 = arith.constant 0 : index
    %c0_1 = arith.constant 0 : index
    %3 = vector.load %arg7[%c0, %c0_1] : memref<8x128xf32, #tpu.memory_space<vmem>>, vector<8x128xf32>
    %c0_2 = arith.constant 0 : index
    %c0_3 = arith.constant 0 : index
    %4 = vector.load %arg2[%c0_2, %c0_3] : memref<8x16xbf16, #tpu.memory_space<vmem>>, vector<8x16xbf16>
    %c0_4 = arith.constant 0 : index
    %c0_5 = arith.constant 0 : index
    %5 = vector.load %arg3[%c0_4, %c0_5] : memref<16x128xbf16, #tpu.memory_space<vmem>>, vector<16x128xbf16>
    %cst = arith.constant dense<0.000000e+00> : vector<8x128xf32>
    %6 = tpu.matmul %4, %5, %cst {dimension_numbers = #tpu.dot_dimension_numbers<[1], [0], [0], [1], [0, 0, 1, 1], [], []>} : vector<8x16xbf16>, vector<16x128xbf16>, vector<8x128xf32> -> vector<8x128xf32>
    %7 = arith.addf %3, %6 : vector<8x128xf32>
    %c0_6 = arith.constant 0 : index
    %c0_7 = arith.constant 0 : index
    %8 = vector.load %arg7[%c0_6, %c0_7] : memref<8x128xf32, #tpu.memory_space<vmem>>, vector<8x128xf32>
    tpu.vector_store %arg7[%c0_6, %c0_7], %7 {strides = array<i32>} : memref<8x128xf32, #tpu.memory_space<vmem>>, vector<8x128xf32>,
    %c0_i32_8 = arith.constant 0 : i32
    %9 = arith.cmpi eq, %arg1, %c0_i32_8 : i32
    %10 = arith.extui %9 : i1 to i32
    %c0_i32_9 = arith.constant 0 : i32
    %11 = arith.cmpi ne, %10, %c0_i32_9 : i32
    scf.if %11 {
      %c0_10 = arith.constant 0 : index
      %c0_11 = arith.constant 0 : index
      %12 = vector.load %arg7[%c0_10, %c0_11] : memref<8x128xf32, #tpu.memory_space<vmem>>, vector<8x128xf32>
      %13 = arith.truncf %12 : vector<8x128xf32> to vector<8x128xbf16>
      %c0_12 = arith.constant 0 : index
      %c0_13 = arith.constant 0 : index
      %14 = vector.load %arg4[%c0_12, %c0_13] : memref<128x128xbf16, #tpu.memory_space<vmem>>, vector<128x128xbf16>
      %cst_14 = arith.constant dense<0.000000e+00> : vector<8x128xf32>
      %15 = tpu.matmul %13, %14, %cst_14 {dimension_numbers = #tpu.dot_dimension_numbers<[1], [0], [0], [1], [0, 0, 1, 1], [], []>} : vector<8x128xbf16>, vector<128x128xbf16>, vector<8x128xf32> -> vector<8x128xf32>
      %c0_15 = arith.constant 0 : index
      %c0_16 = arith.constant 0 : index
      %16 = vector.load %arg5[%c0_15, %c0_16] : memref<1x128xf32, #tpu.memory_space<vmem>>, vector<1x128xf32>
      %17 = vector.broadcast %16 : vector<1x128xf32> to vector<8x128xf32>
      %18 = arith.addf %15, %17 : vector<8x128xf32>
      %19 = arith.negf %18 : vector<8x128xf32>
      %20 = math.exp %19 : vector<8x128xf32>
      %cst_17 = arith.constant 1.000000e+00 : f32
      %21 = vector.broadcast %cst_17 : f32 to vector<8x128xf32>
      %22 = arith.addf %21, %20 : vector<8x128xf32>
      %23 = arith.divf %21, %22 : vector<8x128xf32>
      %c0_18 = arith.constant 0 : index
      %c0_19 = arith.constant 0 : index
      %24 = vector.load %arg6[%c0_18, %c0_19] : memref<8x128xf32, #tpu.memory_space<vmem>>, vector<8x128xf32>
      tpu.vector_store %arg6[%c0_18, %c0_19], %23 {strides = array<i32>} : memref<8x128xf32, #tpu.memory_space<vmem>>, vector<8x128xf32>,
    } else {
    }
    return
  }
  func.func @transform_0(%arg0: i32, %arg1: i32) -> (i32, i32) {
    %c0_i32 = arith.constant 0 : i32
    return %arg0, %arg1 : i32, i32
  }
  func.func @transform_1(%arg0: i32, %arg1: i32) -> (i32, i32) {
    %c0_i32 = arith.constant 0 : i32
    %c0_i32_0 = arith.constant 0 : i32
    return %arg1, %c0_i32 : i32, i32
  }
  func.func @transform_2(%arg0: i32, %arg1: i32) -> (i32, i32) {
    %c0_i32 = arith.constant 0 : i32
    %c0_i32_0 = arith.constant 0 : i32
    %c0_i32_1 = arith.constant 0 : i32
    return %c0_i32, %c0_i32_0 : i32, i32
  }
  func.func @transform_3(%arg0: i32, %arg1: i32) -> (i32, i32) {
    %c0_i32 = arith.constant 0 : i32
    %c0_i32_0 = arith.constant 0 : i32
    %c0_i32_1 = arith.constant 0 : i32
    return %c0_i32, %c0_i32_0 : i32, i32
  }
  func.func @transform_4(%arg0: i32, %arg1: i32) -> (i32, i32) {
    %c0_i32 = arith.constant 0 : i32
    %c0_i32_0 = arith.constant 0 : i32
    return %arg0, %c0_i32 : i32, i32
  }
}

</mosaic_0001>

<llo_original>
// kernel: gcn_forward.2
$region0: #{gcn_forward.2}
  #allocation0 [shape = 'u32[]', space=smem, size = 0x4, offset = 0x4, fixed_abs, tag = 'smem constant byte address 0x4 - core index']
  #allocation1 [shape = 'u32[72,128]{1,0:T(1,128)}', space=vmem, size = 0x9000, scoped, tag = 'internal scratch']
  #allocation2 [shape = 'f32[8,128]{1,0:T(8,128)}', space=vmem, size = 0x1000, scoped, tag = 'scratch operand']
  %s0 = inlined_call_operand.vmem [shape: bf16[16,16], index: 0, kind: input, shape index: {}]
  %s1 = inlined_call_operand.vmem [shape: bf16[16,128], index: 1, kind: input, shape index: {}]
  %s2 = inlined_call_operand.vmem [shape: bf16[128,128], index: 2, kind: input, shape index: {}]
  %s3 = inlined_call_operand.vmem [shape: f32[1,128], index: 3, kind: input, shape index: {}]
  %s4 = inlined_call_operand.vmem [shape: bf16[16,128], index: 4, kind: output, shape index: {}]
  %s5 = sld [smem:[#allocation0]]
  $region57: #{gcn_forward.2} parent=0
    _
  %s7 = ssub.s32 1, %s5
  %s8 = scalar_select 0, %s7, %s5
  loop: start=0, step=1, limit=4
  $region2: #{gcn_forward.2} parent=0 // loop_pre_header
    _
  $region3: #{gcn_forward.2} parent=0 // loop_header
    %s10 = sphi 0, %s14
    %p11 = scmp.ge.s32.totalorder %s10, 4
    %s17 = sphi 0, %s29
    %s18 = sphi 0, %s25
    %s19 = sphi 0, %s17
    %s20 = sphi 0, %s18
    %s21 = sphi 0, %s19
    %s22 = sphi 0, %s20
    %s34 = sphi 0, %s36
    %s37 = sphi 0, %s34
    %s38 = sphi 0, %s37
    %s54 = sphi 0, %s38
    %s60 = sphi 0, %s62
    %s63 = sphi 0, %s60
    %s64 = sphi 0, %s63
    %s80 = sphi 0, %s64
    %s84 = sphi 0, %s84
    %s86 = sphi 0, %s84
    %s87 = sphi 0, %s86
    %s101 = sphi 0, %s87
    %s105 = sphi 0, %s105
    %s107 = sphi 0, %s105
    %s108 = sphi 0, %s107
    %s122 = sphi 0, %s108
    %s128 = sphi 0, %s130
    %s131 = sphi 0, %s128
    %s132 = sphi 0, %s131
    %s148 = sphi 0, %s132
  $region4: #{gcn_forward.2} parent=0 // loop_header_branch
    %13 = sbr.rel (%p11) target = $region8
  $region5: #{gcn_forward.2} parent=0 // loop_body
    %s15 = ssub.s32 %s10, 1
    %s16 = ssub.s32 %s10, 2
    %s23 = sadd.s32 1, %s18
    %p24 = scmp.ge.s32.totalorder %s23, 1
    %s25 = scalar_select %p24, 0, %s23
    %s26 = sadd.s32 1, %s17
    %s27 = scalar_select %p24, %s26, %s17
    %p28 = scmp.ge.s32.totalorder %s27, 2
    %s29 = scalar_select %p28, 0, %s27
    %s30 = ssub.s32 %s17, %s29
    %s31 = ssub.s32 %s18, %s25
    %s32 = sor.u32 %s30, %s31
    %p33 = scmp.eq.s32.totalorder %s32, 0
    %s35 = sadd.s32 %s34, 1
    %s36 = scalar_select %p33, %s34, %s35
    %p39 = pneg %p33
    %p40 = scmp.eq.s32.totalorder %s10, 1
    %p41 = por %p39, %p40
    %p42 = scmp.ne.s32.totalorder %s34, %s37
    %p43 = scmp.eq.s32.totalorder %s10, 0
    %p44 = por %p42, %p43
    %p45 = scmp.ne.s32.totalorder %s34, %s37
    %p46 = scmp.eq.s32.totalorder %s15, 1
    %p47 = por %p45, %p46
    %p48 = scmp.ne.s32.totalorder %s37, %s38
    %p49 = scmp.eq.s32.totalorder %s15, 0
    %p50 = por %p48, %p49
    %p51 = scmp.ne.s32.totalorder %s37, %s38
    %p52 = scmp.eq.s32.totalorder %s16, 1
    %p53 = por %p51, %p52
    %p55 = scmp.ne.s32.totalorder %s38, %s54
    %p56 = scmp.eq.s32.totalorder %s16, 0
    %p57 = por %p55, %p56
    %s58 = ssub.s32 %s18, %s25
    %p59 = scmp.eq.s32.totalorder %s58, 0
    %s61 = sadd.s32 %s60, 1
    %s62 = scalar_select %p59, %s60, %s61
    %p65 = pneg %p59
    %p66 = scmp.eq.s32.totalorder %s10, 1
    %p67 = por %p65, %p66
    %p68 = scmp.ne.s32.totalorder %s60, %s63
    %p69 = scmp.eq.s32.totalorder %s10, 0
    %p70 = por %p68, %p69
    %p71 = scmp.ne.s32.totalorder %s60, %s63
    %p72 = scmp.eq.s32.totalorder %s15, 1
    %p73 = por %p71, %p72
    %p74 = scmp.ne.s32.totalorder %s63, %s64
    %p75 = scmp.eq.s32.totalorder %s15, 0
    %p76 = por %p74, %p75
    %p77 = scmp.ne.s32.totalorder %s63, %s64
    %p78 = scmp.eq.s32.totalorder %s16, 1
    %p79 = por %p77, %p78
    %p81 = scmp.ne.s32.totalorder %s64, %s80
    %p82 = scmp.eq.s32.totalorder %s16, 0
    %p83 = por %p81, %p82
    %s85 = sadd.s32 %s84, 1
    %p88 = scmp.eq.s32.totalorder %s10, 1
    %p89 = scmp.ne.s32.totalorder %s84, %s86
    %p90 = scmp.eq.s32.totalorder %s10, 0
    %p91 = por %p89, %p90
    %p92 = scmp.ne.s32.totalorder %s84, %s86
    %p93 = scmp.eq.s32.totalorder %s15, 1
    %p94 = por %p92, %p93
    %p95 = scmp.ne.s32.totalorder %s86, %s87
    %p96 = scmp.eq.s32.totalorder %s15, 0
    %p97 = por %p95, %p96
    %p98 = scmp.ne.s32.totalorder %s86, %s87
    %p99 = scmp.eq.s32.totalorder %s16, 1
    %p100 = por %p98, %p99
    %p102 = scmp.ne.s32.totalorder %s87, %s101
    %p103 = scmp.eq.s32.totalorder %s16, 0
    %p104 = por %p102, %p103
    %s106 = sadd.s32 %s105, 1
    %p109 = scmp.eq.s32.totalorder %s10, 1
    %p110 = scmp.ne.s32.totalorder %s105, %s107
    %p111 = scmp.eq.s32.totalorder %s10, 0
    %p112 = por %p110, %p111
    %p113 = scmp.ne.s32.totalorder %s105, %s107
    %p114 = scmp.eq.s32.totalorder %s15, 1
    %p115 = por %p113, %p114
    %p116 = scmp.ne.s32.totalorder %s107, %s108
    %p117 = scmp.eq.s32.totalorder %s15, 0
    %p118 = por %p116, %p117
    %p119 = scmp.ne.s32.totalorder %s107, %s108
    %p120 = scmp.eq.s32.totalorder %s16, 1
    %p121 = por %p119, %p120
    %p123 = scmp.ne.s32.totalorder %s108, %s122
    %p124 = scmp.eq.s32.totalorder %s16, 0
    %p125 = por %p123, %p124
    %s126 = ssub.s32 %s17, %s29
    %p127 = scmp.eq.s32.totalorder %s126, 0
    %s129 = sadd.s32 %s128, 1
    %s130 = scalar_select %p127, %s128, %s129
    %p133 = pneg %p127
    %p134 = scmp.eq.s32.totalorder %s10, 1
    %p135 = por %p133, %p134
    %p136 = scmp.ne.s32.totalorder %s128, %s131
    %p137 = scmp.eq.s32.totalorder %s10, 0
    %p138 = por %p136, %p137
    %p139 = scmp.ne.s32.totalorder %s128, %s131
    %p140 = scmp.eq.s32.totalorder %s15, 1
    %p141 = por %p139, %p140
    %p142 = scmp.ne.s32.totalorder %s131, %s132
    %p143 = scmp.eq.s32.totalorder %s15, 0
    %p144 = por %p142, %p143
    %p145 = scmp.ne.s32.totalorder %s131, %s132
    %p146 = scmp.eq.s32.totalorder %s16, 1
    %p147 = por %p145, %p146
    %p149 = scmp.ne.s32.totalorder %s132, %s148
    %p150 = scmp.eq.s32.totalorder %s16, 0
    %p151 = por %p149, %p150
    %p152 = scmp.le.s32.totalorder 1, %s10
    %p153 = scmp.lt.s32.totalorder %s10, 3
    %p154 = pnand %p152, %p153
    %p155 = pneg %p154
    // Predicated region
    $region9: #{gcn_forward.2} parent=5 // pred_check
      _
    $region10: #{gcn_forward.2} parent=5 // pred_check_branch
      %157 = sbr.rel (%p154) target = $region12
    $region11: #{gcn_forward.2} parent=5 // pred_region
      %s158 = ssub.s32 %s10, 1
      // Predicated region
      $region13: #{gcn_forward.2} parent=11 // pred_check
        %p159 = pneg %p76
      $region14: #{gcn_forward.2} parent=11 // pred_check_branch
        %161 = sbr.rel (%p159) target = $region16
      $region15: #{gcn_forward.2} parent=11 // pred_region
        %s162 = smul.u32 2, %s20
        %p163 = scmp.lt.s32.totalorder %s162, 1
        %s164 = scalar_select %p163, %s162, 1
        %s165 = smul.addr %s164, 4
        %s166 = scalar_lea.vmem %s1, %s165
        %s167 = smul.u32 2, %s20
      $region16: #{gcn_forward.2} parent=11 // pred_fallthru
        _
      // Predicated region
      $region17: #{gcn_forward.2} parent=11 // pred_check
        %p168 = pneg %p97
      $region18: #{gcn_forward.2} parent=11 // pred_check_branch
        %170 = sbr.rel (%p168) target = $region20
      $region19: #{gcn_forward.2} parent=11 // pred_region
        _
      $region20: #{gcn_forward.2} parent=11 // pred_fallthru
        _
      // Predicated region
      $region21: #{gcn_forward.2} parent=11 // pred_check
        %p171 = pneg %p118
      $region22: #{gcn_forward.2} parent=11 // pred_check_branch
        %173 = sbr.rel (%p171) target = $region24
      $region23: #{gcn_forward.2} parent=11 // pred_region
        _
      $region24: #{gcn_forward.2} parent=11 // pred_fallthru
        _
    $region12: #{gcn_forward.2} parent=5 // pred_fallthru
      _
    %p174 = scmp.lt.s32.totalorder %s10, 2
    // Predicated region
    $region25: #{gcn_forward.2} parent=5 // pred_check
      %p175 = pneg %p174
    $region26: #{gcn_forward.2} parent=5 // pred_check_branch
      %177 = sbr.rel (%p175) target = $region28
    $region27: #{gcn_forward.2} parent=5 // pred_region
      // Predicated region
      $region29: #{gcn_forward.2} parent=27 // pred_check
        %p178 = pneg %p44
      $region30: #{gcn_forward.2} parent=27 // pred_check_branch
        %180 = sbr.rel (%p178) target = $region32
      $region31: #{gcn_forward.2} parent=27 // pred_region
        %p181 = scmp.lt.s32.totalorder %s17, 1
        %s182 = scalar_select %p181, %s17, 1
        %p183 = scmp.lt.s32.totalorder %s18, 0
        %s184 = scalar_select %p183, %s18, 0
        %s185 = sadd.s32 %s184, %s182
        %s186 = smul.addr %s185, 4
        %s187 = scalar_lea.vmem %s0, %s186
      $region32: #{gcn_forward.2} parent=27 // pred_fallthru
        _
    $region28: #{gcn_forward.2} parent=5 // pred_fallthru
      _
    %p188 = scmp.le.s32.totalorder 1, %s10
    %p189 = scmp.lt.s32.totalorder %s10, 3
    %p190 = pnand %p188, %p189
    %p191 = pneg %p190
    // Predicated region
    $region33: #{gcn_forward.2} parent=5 // pred_check
      _
    $region34: #{gcn_forward.2} parent=5 // pred_check_branch
      %193 = sbr.rel (%p190) target = $region36
    $region35: #{gcn_forward.2} parent=5 // pred_region
      %s194 = ssub.s32 %s10, 1
      %p195 = scmp.lt.s32.totalorder %s19, 1
      %s196 = scalar_select %p195, %s19, 1
      %p197 = scmp.lt.s32.totalorder %s20, 0
      %s198 = scalar_select %p197, %s20, 0
      %s199 = sadd.s32 %s198, %s196
      %s200 = smul.addr %s199, 4
      %s201 = scalar_lea.vmem %s0, %s200
      %p202 = pneg %p50
      %p203 = pneg %p47
      %s204 = smul.u32 2, %s20
      %p205 = scmp.lt.s32.totalorder %s204, 1
      %s206 = scalar_select %p205, %s204, 1
      %s207 = smul.addr %s206, 4
      %s208 = scalar_lea.vmem %s1, %s207
      %p209 = pneg %p76
      %p210 = pneg %p73
      %p211 = pneg %p97
      %p212 = pneg %p94
      %p213 = pneg %p118
      %p214 = pneg %p115
      %p215 = pneg %p144
      %p216 = pneg %p141
      %p217 = scmp.lt.s32.totalorder %s19, 1
      %s218 = scalar_select %p217, %s19, 1
      %s219 = smul.addr %s218, 4
      %s220 = scalar_lea.vmem %s4, %s219
      %p221 = scmp.lt.s32.totalorder %s19, 1
      %s222 = scalar_select %p221, %s19, 1
      %p223 = scmp.lt.s32.totalorder %s20, 0
      %s224 = scalar_select %p223, %s20, 0
      %s225 = sadd.s32 %s224, %s222
      %s226 = smul.addr %s225, 4
      %s227 = scalar_lea.vmem %s0, %s226
      %s228 = smul.u32 2, %s20
      %p229 = scmp.lt.s32.totalorder %s228, 1
      %s230 = scalar_select %p229, %s228, 1
      %s231 = smul.addr %s230, 4
      %s232 = scalar_lea.vmem %s1, %s231
      %s233 = smul.u32 2, %s20
      %p234 = scmp.lt.s32.totalorder %s19, 1
      %s235 = scalar_select %p234, %s19, 1
      %s236 = smul.addr %s235, 4
      %s237 = scalar_lea.vmem %s4, %s236
      %p239 = scmp.eq.s32.totalorder %s20, 0
      // Predicated region
      $region37: #{gcn_forward.2} parent=35 // pred_check
        %p240 = pneg %p239
      $region38: #{gcn_forward.2} parent=35 // pred_check_branch
        %242 = sbr.rel (%p240) target = $region40
      $region39: #{gcn_forward.2} parent=35 // pred_region
        %243 = vst [vmem:[#allocation2] sm:$0xff] 0.0
      $region40: #{gcn_forward.2} parent=35 // pred_fallthru
        _
      %v244 = vld [vmem:[#allocation2] sm:$0xff]
      %v245 = vld [vmem:[%s227] sm:$0xf]
      %v246 = vld [vmem:[%s232] sm:$0xf]
      %v247 = vld [vmem:[%s232 + $0x4] sm:$0xf]
      %v250 = vunpack.c.l.b16 %v246
      %v251 = vunpack.c.l.b16 %v247
      %v252 = vpack.c.b16 %v251, %v250
      %vm254 = vcmask 130048
      %v256 = vsel %vm254, %v245, 0
      %258 = vmatpush.bf16.msra.mxu0 0
      %259 = vmatpush.bf16.msra.mxu0 0
      %260 = vmatpush.bf16.msra.mxu0 0
      %261 = vmatpush.bf16.msra.mxu0 0
      %262 = vmatpush.bf16.msra.mxu0 0
      %263 = vmatpush.bf16.msra.mxu0 0
      %264 = vmatpush.bf16.msra.mxu0 0
      %265 = vmatpush.bf16.msra.mxu0 %v252
      %266 = vmatmul.bf16.gmra.mxu0 %v256
      %v267 = vpop.f32.mrf.mxu0
      %v268 = vadd.f32 0.0, %v267
      %v269 = vpop.f32.mrf.mxu0
      %270 = vdwg.mxu0
      %v271 = vadd.f32 %v244, %v268
      %272 = vst [vmem:[#allocation2] sm:$0xff] %v271
      // Predicated region
      $region41: #{gcn_forward.2} parent=35 // pred_check
        %p273 = pneg %p239
      $region42: #{gcn_forward.2} parent=35 // pred_check_branch
        %275 = sbr.rel (%p273) target = $region44
      $region43: #{gcn_forward.2} parent=35 // pred_region
        %v276 = vld [vmem:[#allocation2] sm:$0xff]
        %v277 = vpack.c.bf16 %v276, %v276
        %v278 = vld [vmem:[%s2] sm:$0xf]
        %v279 = vld [vmem:[%s2 + $0x4] sm:$0xf]
        %v280 = vld [vmem:[%s2 + $0x8] sm:$0xf]
        %v281 = vld [vmem:[%s2 + $0xc] sm:$0xf]
        %v282 = vld [vmem:[%s2 + $0x10] sm:$0xf]
        %v283 = vld [vmem:[%s2 + $0x14] sm:$0xf]
        %v284 = vld [vmem:[%s2 + $0x18] sm:$0xf]
        %v285 = vld [vmem:[%s2 + $0x1c] sm:$0xf]
        %v286 = vld [vmem:[%s2 + $0x20] sm:$0xf]
        %v287 = vld [vmem:[%s2 + $0x24] sm:$0xf]
        %v288 = vld [vmem:[%s2 + $0x28] sm:$0xf]
        %v289 = vld [vmem:[%s2 + $0x2c] sm:$0xf]
        %v290 = vld [vmem:[%s2 + $0x30] sm:$0xf]
        %v291 = vld [vmem:[%s2 + $0x34] sm:$0xf]
        %v292 = vld [vmem:[%s2 + $0x38] sm:$0xf]
        %v293 = vld [vmem:[%s2 + $0x3c] sm:$0xf]
        %v294 = vld [vmem:[%s3] sm:$0x1]
        %v296 = vperm.slane %v294, 0
        %v314 = vunpack.c.l.b16 %v278
        %v315 = vunpack.c.l.b16 %v279
        %v316 = vunpack.c.l.b16 %v280
        %v317 = vunpack.c.l.b16 %v281
        %v318 = vunpack.c.l.b16 %v282
        %v319 = vunpack.c.l.b16 %v283
        %v320 = vunpack.c.l.b16 %v284
        %v321 = vunpack.c.l.b16 %v285
        %v322 = vunpack.c.l.b16 %v286
        %v323 = vunpack.c.l.b16 %v287
        %v324 = vunpack.c.l.b16 %v288
        %v325 = vunpack.c.l.b16 %v289
        %v326 = vunpack.c.l.b16 %v290
        %v327 = vunpack.c.l.b16 %v291
        %v328 = vunpack.c.l.b16 %v292
        %v329 = vunpack.c.l.b16 %v293
        %v330 = vpack.c.b16 %v315, %v314
        %v331 = vpack.c.b16 %v317, %v316
        %v332 = vpack.c.b16 %v319, %v318
        %v333 = vpack.c.b16 %v321, %v320
        %v334 = vpack.c.b16 %v323, %v322
        %v335 = vpack.c.b16 %v325, %v324
        %v336 = vpack.c.b16 %v327, %v326
        %v337 = vpack.c.b16 %v329, %v328
        %346 = vmatpush.bf16.msra.mxu0 %v337
        %347 = vmatpush.bf16.msra.mxu0 %v336
        %348 = vmatpush.bf16.msra.mxu0 %v335
        %349 = vmatpush.bf16.msra.mxu0 %v334
        %350 = vmatpush.bf16.msra.mxu0 %v333
        %351 = vmatpush.bf16.msra.mxu0 %v332
        %352 = vmatpush.bf16.msra.mxu0 %v331
        %353 = vmatpush.bf16.msra.mxu0 %v330
        %354 = vmatmul.bf16.gmra.mxu0 %v277
        %v355 = vpop.f32.mrf.mxu0
        %v356 = vadd.f32 %v296, %v355
        %v357 = vpop.f32.mrf.mxu0
        %358 = vdwg.mxu0
        %v359 = vpack.c.bf16 %v356, %v356
        %360 = vst [vmem:[%s237] sm:$0xf] %v359
      $region44: #{gcn_forward.2} parent=35 // pred_fallthru
        _
      %p361 = scmp.lt.s32.totalorder %s19, 1
      %s362 = scalar_select %p361, %s19, 1
      %s363 = smul.addr %s362, 4
      %s364 = scalar_lea.vmem %s4, %s363
      // Predicated region
      $region45: #{gcn_forward.2} parent=35 // pred_check
        %p365 = pneg %p141
      $region46: #{gcn_forward.2} parent=35 // pred_check_branch
        %367 = sbr.rel (%p365) target = $region48
      $region47: #{gcn_forward.2} parent=35 // pred_region
        _
      $region48: #{gcn_forward.2} parent=35 // pred_fallthru
        _
    $region36: #{gcn_forward.2} parent=5 // pred_fallthru
      _
    %p368 = scmp.le.s32.totalorder 2, %s10
    // Predicated region
    $region49: #{gcn_forward.2} parent=5 // pred_check
      %p369 = pneg %p368
    $region50: #{gcn_forward.2} parent=5 // pred_check_branch
      %371 = sbr.rel (%p369) target = $region52
    $region51: #{gcn_forward.2} parent=5 // pred_region
      %s372 = ssub.s32 %s10, 2
      // Predicated region
      $region53: #{gcn_forward.2} parent=51 // pred_check
        %p373 = pneg %p147
      $region54: #{gcn_forward.2} parent=51 // pred_check_branch
        %375 = sbr.rel (%p373) target = $region56
      $region55: #{gcn_forward.2} parent=51 // pred_region
        %p376 = scmp.lt.s32.totalorder %s21, 1
        %s377 = scalar_select %p376, %s21, 1
        %s378 = smul.addr %s377, 4
        %s379 = scalar_lea.vmem %s4, %s378
      $region56: #{gcn_forward.2} parent=51 // pred_fallthru
        _
    $region52: #{gcn_forward.2} parent=5 // pred_fallthru
      _
  $region6: #{gcn_forward.2} parent=0 // loop_footer
    %s14 = sadd.s32 1, %s10
  $region7: #{gcn_forward.2} parent=0 // loop_footer_branch
    %9 = sbr.rel target = $region3
  $region8: #{gcn_forward.2} parent=0 // loop_exit
    _

// kernel: gcn_forward.3
$region0: #{gcn_forward.3}
  #allocation0 [shape = 'u32[]', space=smem, size = 0x4, offset = 0x4, fixed_abs, tag = 'smem constant byte address 0x4 - core index']
  #allocation1 [shape = 'u32[72,128]{1,0:T(1,128)}', space=vmem, size = 0x9000, scoped, tag = 'internal scratch']
  #allocation2 [shape = 'f32[8,128]{1,0:T(8,128)}', space=vmem, size = 0x1000, scoped, tag = 'scratch operand']
  %s0 = inlined_call_operand.vmem [shape: bf16[16,16], index: 0, kind: input, shape index: {}]
  %s1 = inlined_call_operand.vmem [shape: bf16[16,128], index: 1, kind: input, shape index: {}]
  %s2 = inlined_call_operand.vmem [shape: bf16[128,128], index: 2, kind: input, shape index: {}]
  %s3 = inlined_call_operand.vmem [shape: f32[1,128], index: 3, kind: input, shape index: {}]
  %s4 = inlined_call_operand.vmem [shape: f32[16,128], index: 4, kind: output, shape index: {}]
  %s5 = sld [smem:[#allocation0]]
  $region57: #{gcn_forward.3} parent=0
    _
  %s7 = ssub.s32 1, %s5
  %s8 = scalar_select 0, %s7, %s5
  loop: start=0, step=1, limit=4
  $region2: #{gcn_forward.3} parent=0 // loop_pre_header
    _
  $region3: #{gcn_forward.3} parent=0 // loop_header
    %s10 = sphi 0, %s14
    %p11 = scmp.ge.s32.totalorder %s10, 4
    %s17 = sphi 0, %s29
    %s18 = sphi 0, %s25
    %s19 = sphi 0, %s17
    %s20 = sphi 0, %s18
    %s21 = sphi 0, %s19
    %s22 = sphi 0, %s20
    %s34 = sphi 0, %s36
    %s37 = sphi 0, %s34
    %s38 = sphi 0, %s37
    %s54 = sphi 0, %s38
    %s60 = sphi 0, %s62
    %s63 = sphi 0, %s60
    %s64 = sphi 0, %s63
    %s80 = sphi 0, %s64
    %s84 = sphi 0, %s84
    %s86 = sphi 0, %s84
    %s87 = sphi 0, %s86
    %s101 = sphi 0, %s87
    %s105 = sphi 0, %s105
    %s107 = sphi 0, %s105
    %s108 = sphi 0, %s107
    %s122 = sphi 0, %s108
    %s128 = sphi 0, %s130
    %s131 = sphi 0, %s128
    %s132 = sphi 0, %s131
    %s148 = sphi 0, %s132
  $region4: #{gcn_forward.3} parent=0 // loop_header_branch
    %13 = sbr.rel (%p11) target = $region8
  $region5: #{gcn_forward.3} parent=0 // loop_body
    %s15 = ssub.s32 %s10, 1
    %s16 = ssub.s32 %s10, 2
    %s23 = sadd.s32 1, %s18
    %p24 = scmp.ge.s32.totalorder %s23, 1
    %s25 = scalar_select %p24, 0, %s23
    %s26 = sadd.s32 1, %s17
    %s27 = scalar_select %p24, %s26, %s17
    %p28 = scmp.ge.s32.totalorder %s27, 2
    %s29 = scalar_select %p28, 0, %s27
    %s30 = ssub.s32 %s17, %s29
    %s31 = ssub.s32 %s18, %s25
    %s32 = sor.u32 %s30, %s31
    %p33 = scmp.eq.s32.totalorder %s32, 0
    %s35 = sadd.s32 %s34, 1
    %s36 = scalar_select %p33, %s34, %s35
    %p39 = pneg %p33
    %p40 = scmp.eq.s32.totalorder %s10, 1
    %p41 = por %p39, %p40
    %p42 = scmp.ne.s32.totalorder %s34, %s37
    %p43 = scmp.eq.s32.totalorder %s10, 0
    %p44 = por %p42, %p43
    %p45 = scmp.ne.s32.totalorder %s34, %s37
    %p46 = scmp.eq.s32.totalorder %s15, 1
    %p47 = por %p45, %p46
    %p48 = scmp.ne.s32.totalorder %s37, %s38
    %p49 = scmp.eq.s32.totalorder %s15, 0
    %p50 = por %p48, %p49
    %p51 = scmp.ne.s32.totalorder %s37, %s38
    %p52 = scmp.eq.s32.totalorder %s16, 1
    %p53 = por %p51, %p52
    %p55 = scmp.ne.s32.totalorder %s38, %s54
    %p56 = scmp.eq.s32.totalorder %s16, 0
    %p57 = por %p55, %p56
    %s58 = ssub.s32 %s18, %s25
    %p59 = scmp.eq.s32.totalorder %s58, 0
    %s61 = sadd.s32 %s60, 1
    %s62 = scalar_select %p59, %s60, %s61
    %p65 = pneg %p59
    %p66 = scmp.eq.s32.totalorder %s10, 1
    %p67 = por %p65, %p66
    %p68 = scmp.ne.s32.totalorder %s60, %s63
    %p69 = scmp.eq.s32.totalorder %s10, 0
    %p70 = por %p68, %p69
    %p71 = scmp.ne.s32.totalorder %s60, %s63
    %p72 = scmp.eq.s32.totalorder %s15, 1
    %p73 = por %p71, %p72
    %p74 = scmp.ne.s32.totalorder %s63, %s64
    %p75 = scmp.eq.s32.totalorder %s15, 0
    %p76 = por %p74, %p75
    %p77 = scmp.ne.s32.totalorder %s63, %s64
    %p78 = scmp.eq.s32.totalorder %s16, 1
    %p79 = por %p77, %p78
    %p81 = scmp.ne.s32.totalorder %s64, %s80
    %p82 = scmp.eq.s32.totalorder %s16, 0
    %p83 = por %p81, %p82
    %s85 = sadd.s32 %s84, 1
    %p88 = scmp.eq.s32.totalorder %s10, 1
    %p89 = scmp.ne.s32.totalorder %s84, %s86
    %p90 = scmp.eq.s32.totalorder %s10, 0
    %p91 = por %p89, %p90
    %p92 = scmp.ne.s32.totalorder %s84, %s86
    %p93 = scmp.eq.s32.totalorder %s15, 1
    %p94 = por %p92, %p93
    %p95 = scmp.ne.s32.totalorder %s86, %s87
    %p96 = scmp.eq.s32.totalorder %s15, 0
    %p97 = por %p95, %p96
    %p98 = scmp.ne.s32.totalorder %s86, %s87
    %p99 = scmp.eq.s32.totalorder %s16, 1
    %p100 = por %p98, %p99
    %p102 = scmp.ne.s32.totalorder %s87, %s101
    %p103 = scmp.eq.s32.totalorder %s16, 0
    %p104 = por %p102, %p103
    %s106 = sadd.s32 %s105, 1
    %p109 = scmp.eq.s32.totalorder %s10, 1
    %p110 = scmp.ne.s32.totalorder %s105, %s107
    %p111 = scmp.eq.s32.totalorder %s10, 0
    %p112 = por %p110, %p111
    %p113 = scmp.ne.s32.totalorder %s105, %s107
    %p114 = scmp.eq.s32.totalorder %s15, 1
    %p115 = por %p113, %p114
    %p116 = scmp.ne.s32.totalorder %s107, %s108
    %p117 = scmp.eq.s32.totalorder %s15, 0
    %p118 = por %p116, %p117
    %p119 = scmp.ne.s32.totalorder %s107, %s108
    %p120 = scmp.eq.s32.totalorder %s16, 1
    %p121 = por %p119, %p120
    %p123 = scmp.ne.s32.totalorder %s108, %s122
    %p124 = scmp.eq.s32.totalorder %s16, 0
    %p125 = por %p123, %p124
    %s126 = ssub.s32 %s17, %s29
    %p127 = scmp.eq.s32.totalorder %s126, 0
    %s129 = sadd.s32 %s128, 1
    %s130 = scalar_select %p127, %s128, %s129
    %p133 = pneg %p127
    %p134 = scmp.eq.s32.totalorder %s10, 1
    %p135 = por %p133, %p134
    %p136 = scmp.ne.s32.totalorder %s128, %s131
    %p137 = scmp.eq.s32.totalorder %s10, 0
    %p138 = por %p136, %p137
    %p139 = scmp.ne.s32.totalorder %s128, %s131
    %p140 = scmp.eq.s32.totalorder %s15, 1
    %p141 = por %p139, %p140
    %p142 = scmp.ne.s32.totalorder %s131, %s132
    %p143 = scmp.eq.s32.totalorder %s15, 0
    %p144 = por %p142, %p143
    %p145 = scmp.ne.s32.totalorder %s131, %s132
    %p146 = scmp.eq.s32.totalorder %s16, 1
    %p147 = por %p145, %p146
    %p149 = scmp.ne.s32.totalorder %s132, %s148
    %p150 = scmp.eq.s32.totalorder %s16, 0
    %p151 = por %p149, %p150
    %p152 = scmp.le.s32.totalorder 1, %s10
    %p153 = scmp.lt.s32.totalorder %s10, 3
    %p154 = pnand %p152, %p153
    %p155 = pneg %p154
    // Predicated region
    $region9: #{gcn_forward.3} parent=5 // pred_check
      _
    $region10: #{gcn_forward.3} parent=5 // pred_check_branch
      %157 = sbr.rel (%p154) target = $region12
    $region11: #{gcn_forward.3} parent=5 // pred_region
      %s158 = ssub.s32 %s10, 1
      // Predicated region
      $region13: #{gcn_forward.3} parent=11 // pred_check
        %p159 = pneg %p76
      $region14: #{gcn_forward.3} parent=11 // pred_check_branch
        %161 = sbr.rel (%p159) target = $region16
      $region15: #{gcn_forward.3} parent=11 // pred_region
        %s162 = smul.u32 2, %s20
        %p163 = scmp.lt.s32.totalorder %s162, 1
        %s164 = scalar_select %p163, %s162, 1
        %s165 = smul.addr %s164, 4
        %s166 = scalar_lea.vmem %s1, %s165
        %s167 = smul.u32 2, %s20
      $region16: #{gcn_forward.3} parent=11 // pred_fallthru
        _
      // Predicated region
      $region17: #{gcn_forward.3} parent=11 // pred_check
        %p168 = pneg %p97
      $region18: #{gcn_forward.3} parent=11 // pred_check_branch
        %170 = sbr.rel (%p168) target = $region20
      $region19: #{gcn_forward.3} parent=11 // pred_region
        _
      $region20: #{gcn_forward.3} parent=11 // pred_fallthru
        _
      // Predicated region
      $region21: #{gcn_forward.3} parent=11 // pred_check
        %p171 = pneg %p118
      $region22: #{gcn_forward.3} parent=11 // pred_check_branch
        %173 = sbr.rel (%p171) target = $region24
      $region23: #{gcn_forward.3} parent=11 // pred_region
        _
      $region24: #{gcn_forward.3} parent=11 // pred_fallthru
        _
    $region12: #{gcn_forward.3} parent=5 // pred_fallthru
      _
    %p174 = scmp.lt.s32.totalorder %s10, 2
    // Predicated region
    $region25: #{gcn_forward.3} parent=5 // pred_check
      %p175 = pneg %p174
    $region26: #{gcn_forward.3} parent=5 // pred_check_branch
      %177 = sbr.rel (%p175) target = $region28
    $region27: #{gcn_forward.3} parent=5 // pred_region
      // Predicated region
      $region29: #{gcn_forward.3} parent=27 // pred_check
        %p178 = pneg %p44
      $region30: #{gcn_forward.3} parent=27 // pred_check_branch
        %180 = sbr.rel (%p178) target = $region32
      $region31: #{gcn_forward.3} parent=27 // pred_region
        %p181 = scmp.lt.s32.totalorder %s17, 1
        %s182 = scalar_select %p181, %s17, 1
        %p183 = scmp.lt.s32.totalorder %s18, 0
        %s184 = scalar_select %p183, %s18, 0
        %s185 = sadd.s32 %s184, %s182
        %s186 = smul.addr %s185, 4
        %s187 = scalar_lea.vmem %s0, %s186
      $region32: #{gcn_forward.3} parent=27 // pred_fallthru
        _
    $region28: #{gcn_forward.3} parent=5 // pred_fallthru
      _
    %p188 = scmp.le.s32.totalorder 1, %s10
    %p189 = scmp.lt.s32.totalorder %s10, 3
    %p190 = pnand %p188, %p189
    %p191 = pneg %p190
    // Predicated region
    $region33: #{gcn_forward.3} parent=5 // pred_check
      _
    $region34: #{gcn_forward.3} parent=5 // pred_check_branch
      %193 = sbr.rel (%p190) target = $region36
    $region35: #{gcn_forward.3} parent=5 // pred_region
      %s194 = ssub.s32 %s10, 1
      %p195 = scmp.lt.s32.totalorder %s19, 1
      %s196 = scalar_select %p195, %s19, 1
      %p197 = scmp.lt.s32.totalorder %s20, 0
      %s198 = scalar_select %p197, %s20, 0
      %s199 = sadd.s32 %s198, %s196
      %s200 = smul.addr %s199, 4
      %s201 = scalar_lea.vmem %s0, %s200
      %p202 = pneg %p50
      %p203 = pneg %p47
      %s204 = smul.u32 2, %s20
      %p205 = scmp.lt.s32.totalorder %s204, 1
      %s206 = scalar_select %p205, %s204, 1
      %s207 = smul.addr %s206, 4
      %s208 = scalar_lea.vmem %s1, %s207
      %p209 = pneg %p76
      %p210 = pneg %p73
      %p211 = pneg %p97
      %p212 = pneg %p94
      %p213 = pneg %p118
      %p214 = pneg %p115
      %p215 = pneg %p144
      %p216 = pneg %p141
      %p217 = scmp.lt.s32.totalorder %s19, 1
      %s218 = scalar_select %p217, %s19, 1
      %s219 = smul.addr %s218, 8
      %s220 = scalar_lea.vmem %s4, %s219
      %p221 = scmp.lt.s32.totalorder %s19, 1
      %s222 = scalar_select %p221, %s19, 1
      %p223 = scmp.lt.s32.totalorder %s20, 0
      %s224 = scalar_select %p223, %s20, 0
      %s225 = sadd.s32 %s224, %s222
      %s226 = smul.addr %s225, 4
      %s227 = scalar_lea.vmem %s0, %s226
      %s228 = smul.u32 2, %s20
      %p229 = scmp.lt.s32.totalorder %s228, 1
      %s230 = scalar_select %p229, %s228, 1
      %s231 = smul.addr %s230, 4
      %s232 = scalar_lea.vmem %s1, %s231
      %s233 = smul.u32 2, %s20
      %p234 = scmp.lt.s32.totalorder %s19, 1
      %s235 = scalar_select %p234, %s19, 1
      %s236 = smul.addr %s235, 8
      %s237 = scalar_lea.vmem %s4, %s236
      %p239 = scmp.eq.s32.totalorder %s20, 0
      // Predicated region
      $region37: #{gcn_forward.3} parent=35 // pred_check
        %p240 = pneg %p239
      $region38: #{gcn_forward.3} parent=35 // pred_check_branch
        %242 = sbr.rel (%p240) target = $region40
      $region39: #{gcn_forward.3} parent=35 // pred_region
        %243 = vst [vmem:[#allocation2] sm:$0xff] 0.0
      $region40: #{gcn_forward.3} parent=35 // pred_fallthru
        _
      %v244 = vld [vmem:[#allocation2] sm:$0xff]
      %v245 = vld [vmem:[%s227] sm:$0xf]
      %v246 = vld [vmem:[%s232] sm:$0xf]
      %v247 = vld [vmem:[%s232 + $0x4] sm:$0xf]
      %v250 = vunpack.c.l.b16 %v246
      %v251 = vunpack.c.l.b16 %v247
      %v252 = vpack.c.b16 %v251, %v250
      %vm254 = vcmask 130048
      %v256 = vsel %vm254, %v245, 0
      %258 = vmatpush.bf16.msra.mxu0 0
      %259 = vmatpush.bf16.msra.mxu0 0
      %260 = vmatpush.bf16.msra.mxu0 0
      %261 = vmatpush.bf16.msra.mxu0 0
      %262 = vmatpush.bf16.msra.mxu0 0
      %263 = vmatpush.bf16.msra.mxu0 0
      %264 = vmatpush.bf16.msra.mxu0 0
      %265 = vmatpush.bf16.msra.mxu0 %v252
      %266 = vmatmul.bf16.gmra.mxu0 %v256
      %v267 = vpop.f32.mrf.mxu0
      %v268 = vadd.f32 0.0, %v267
      %v269 = vpop.f32.mrf.mxu0
      %270 = vdwg.mxu0
      %v271 = vadd.f32 %v244, %v268
      %272 = vst [vmem:[#allocation2] sm:$0xff] %v271
      // Predicated region
      $region41: #{gcn_forward.3} parent=35 // pred_check
        %p273 = pneg %p239
      $region42: #{gcn_forward.3} parent=35 // pred_check_branch
        %275 = sbr.rel (%p273) target = $region44
      $region43: #{gcn_forward.3} parent=35 // pred_region
        %v276 = vld [vmem:[#allocation2] sm:$0xff]
        %v277 = vpack.c.bf16 %v276, %v276
        %v278 = vld [vmem:[%s2] sm:$0xf]
        %v279 = vld [vmem:[%s2 + $0x4] sm:$0xf]
        %v280 = vld [vmem:[%s2 + $0x8] sm:$0xf]
        %v281 = vld [vmem:[%s2 + $0xc] sm:$0xf]
        %v282 = vld [vmem:[%s2 + $0x10] sm:$0xf]
        %v283 = vld [vmem:[%s2 + $0x14] sm:$0xf]
        %v284 = vld [vmem:[%s2 + $0x18] sm:$0xf]
        %v285 = vld [vmem:[%s2 + $0x1c] sm:$0xf]
        %v286 = vld [vmem:[%s2 + $0x20] sm:$0xf]
        %v287 = vld [vmem:[%s2 + $0x24] sm:$0xf]
        %v288 = vld [vmem:[%s2 + $0x28] sm:$0xf]
        %v289 = vld [vmem:[%s2 + $0x2c] sm:$0xf]
        %v290 = vld [vmem:[%s2 + $0x30] sm:$0xf]
        %v291 = vld [vmem:[%s2 + $0x34] sm:$0xf]
        %v292 = vld [vmem:[%s2 + $0x38] sm:$0xf]
        %v293 = vld [vmem:[%s2 + $0x3c] sm:$0xf]
        %v294 = vld [vmem:[%s3] sm:$0x1]
        %v296 = vperm.slane %v294, 0
        %v314 = vunpack.c.l.b16 %v278
        %v315 = vunpack.c.l.b16 %v279
        %v316 = vunpack.c.l.b16 %v280
        %v317 = vunpack.c.l.b16 %v281
        %v318 = vunpack.c.l.b16 %v282
        %v319 = vunpack.c.l.b16 %v283
        %v320 = vunpack.c.l.b16 %v284
        %v321 = vunpack.c.l.b16 %v285
        %v322 = vunpack.c.l.b16 %v286
        %v323 = vunpack.c.l.b16 %v287
        %v324 = vunpack.c.l.b16 %v288
        %v325 = vunpack.c.l.b16 %v289
        %v326 = vunpack.c.l.b16 %v290
        %v327 = vunpack.c.l.b16 %v291
        %v328 = vunpack.c.l.b16 %v292
        %v329 = vunpack.c.l.b16 %v293
        %v330 = vpack.c.b16 %v315, %v314
        %v331 = vpack.c.b16 %v317, %v316
        %v332 = vpack.c.b16 %v319, %v318
        %v333 = vpack.c.b16 %v321, %v320
        %v334 = vpack.c.b16 %v323, %v322
        %v335 = vpack.c.b16 %v325, %v324
        %v336 = vpack.c.b16 %v327, %v326
        %v337 = vpack.c.b16 %v329, %v328
        %346 = vmatpush.bf16.msra.mxu0 %v337
        %347 = vmatpush.bf16.msra.mxu0 %v336
        %348 = vmatpush.bf16.msra.mxu0 %v335
        %349 = vmatpush.bf16.msra.mxu0 %v334
        %350 = vmatpush.bf16.msra.mxu0 %v333
        %351 = vmatpush.bf16.msra.mxu0 %v332
        %352 = vmatpush.bf16.msra.mxu0 %v331
        %353 = vmatpush.bf16.msra.mxu0 %v330
        %354 = vmatmul.bf16.gmra.mxu0 %v277
        %v355 = vpop.f32.mrf.mxu0
        %v356 = vadd.f32 %v296, %v355
        %v357 = vpop.f32.mrf.mxu0
        %358 = vdwg.mxu0
        %v359 = vxor.u32 %v356, 2147483648
        %v360 = vmul.f32 %v359, 1.442695
        %v361 = vpow.pop %v360
        %v362 = vadd.f32 %v361, 1.0
        %v363 = vrcp.pop %v362
        %v364 = vmul.f32 %v362, %v363
        %v365 = vsub.f32 1.0, %v364
        %v366 = vmul.f32 %v363, %v365
        %v367 = vadd.f32 %v363, %v366
        %vm368 = vweird.f32 %v362
        %vm369 = vweird.f32 %v363
        %vm370 = vmor %vm368, %vm369
        %v371 = vsel %vm370, %v363, %v367
        %v372 = vand.u32 2147483647, %v362
        %vm373 = vcmp.eq.f32.partialorder %v372, 8.507059e+37
        %v374 = vand.u32 %v362, 2147483648
        %v375 = vor.u32 1.1754944e-38, %v374
        %v376 = vsel %vm373, %v375, %v371
        %v377 = vmul.f32 1.0, %v376
        %378 = vst [vmem:[%s237] sm:$0xff] %v377
      $region44: #{gcn_forward.3} parent=35 // pred_fallthru
        _
      %p379 = scmp.lt.s32.totalorder %s19, 1
      %s380 = scalar_select %p379, %s19, 1
      %s381 = smul.addr %s380, 8
      %s382 = scalar_lea.vmem %s4, %s381
      // Predicated region
      $region45: #{gcn_forward.3} parent=35 // pred_check
        %p383 = pneg %p141
      $region46: #{gcn_forward.3} parent=35 // pred_check_branch
        %385 = sbr.rel (%p383) target = $region48
      $region47: #{gcn_forward.3} parent=35 // pred_region
        _
      $region48: #{gcn_forward.3} parent=35 // pred_fallthru
        _
    $region36: #{gcn_forward.3} parent=5 // pred_fallthru
      _
    %p386 = scmp.le.s32.totalorder 2, %s10
    // Predicated region
    $region49: #{gcn_forward.3} parent=5 // pred_check
      %p387 = pneg %p386
    $region50: #{gcn_forward.3} parent=5 // pred_check_branch
      %389 = sbr.rel (%p387) target = $region52
    $region51: #{gcn_forward.3} parent=5 // pred_region
      %s390 = ssub.s32 %s10, 2
      // Predicated region
      $region53: #{gcn_forward.3} parent=51 // pred_check
        %p391 = pneg %p147
      $region54: #{gcn_forward.3} parent=51 // pred_check_branch
        %393 = sbr.rel (%p391) target = $region56
      $region55: #{gcn_forward.3} parent=51 // pred_region
        %p394 = scmp.lt.s32.totalorder %s21, 1
        %s395 = scalar_select %p394, %s21, 1
        %s396 = smul.addr %s395, 8
        %s397 = scalar_lea.vmem %s4, %s396
      $region56: #{gcn_forward.3} parent=51 // pred_fallthru
        _
    $region52: #{gcn_forward.3} parent=5 // pred_fallthru
      _
  $region6: #{gcn_forward.3} parent=0 // loop_footer
    %s14 = sadd.s32 1, %s10
  $region7: #{gcn_forward.3} parent=0 // loop_footer_branch
    %9 = sbr.rel target = $region3
  $region8: #{gcn_forward.3} parent=0 // loop_exit
    _

</llo_original>
